<compile_context>
chip_gen: v5e
topology: v5e:2x2
jax: 0.10.0
libtpu: 0.0.40
codegen_flags: <defaults>
</compile_context>

<pallas_src>
import functools

import jax
import jax.numpy as jnp
from jax import lax
from jax.experimental import pallas as pl
from jax.experimental.pallas import tpu as pltpu


def _round_up(n, m):
    return ((n + m - 1) // m) * m


def _cdiv(a, b):
    return -(-a // b)


def nn_binclass_kernel(x_ref, w1_ref, b1_ref, w2_ref, b2_ref, w3_ref, b3_ref, out_ref):
    """One batch tile, transposed dataflow: activations are (features, tile).

    Batch rides the lane axis, so the Softsign / sigmoid elementwise work and the
    final store are lane-dense instead of 10-wide (8% lane utilization) slabs.
    """
    # layer0: hT[o, b] = sum_i W1[o, i] * x[b, i]  -> (10, tile); f32 accumulation on MXU.
    h = lax.dot_general(
        w1_ref[...], x_ref[...],
        dimension_numbers=(((1,), (1,)), ((), ())),   # contract the 80-dim of both (NT form)
        preferred_element_type=jnp.float32)
    h = h + b1_ref[...]                               # (10, 1) broadcasts along lanes
    # Softsign(x) = x / (1 + |x|); approximate reciprocal rides the EUP slot.
    h = h * pl.reciprocal(1.0 + jnp.abs(h), approx=True)

    # layer1: Linear(10 -> 10): (10, 10) @ (10, tile), then Softsign.
    h = jnp.dot(w2_ref[...], h, preferred_element_type=jnp.float32) + b2_ref[...]
    h = h * pl.reciprocal(1.0 + jnp.abs(h), approx=True)

    # linear_out: Linear(10 -> 1): (1, 10) @ (10, tile) -> lane-dense (1, tile).
    z = jnp.dot(w3_ref[...], h, preferred_element_type=jnp.float32) + b3_ref[...]

    # Sigmoid(z) = 0.5 * (tanh(z/2) + 1): one EUP transcendental, no exp overflow.
    out_ref[...] = (0.5 * (jnp.tanh(0.5 * z) + 1.0))[None]    # (1, 1, tile)


_MIN_GRID_STEPS = 4  # give v7x's two TensorCores work to split; costs nothing on v5e/v6e


@functools.partial(jax.jit, static_argnames=("tile_b",))
def nn_binclass_forward(x, params, *, tile_b=16384):
    """Batch-tiled forward (defaults of NN_BinClass: 2 hidden layers of 10 + output).

    x is streamed HBM->VMEM in its stored dtype (no extra cast/pad pass); weights and
    biases use constant index maps so they stay VMEM-resident across grid steps. The
    ragged tail block over-reads past `batch`; those junk rows are sliced off below.
    """
    w1, b1, w2, b2, w3, b3 = params
    batch, in_features = x.shape
    x = x.astype(jnp.float32)

    # Biases as columns so they broadcast over the lane (batch) axis in-kernel.
    b1c = b1.reshape(-1, 1).astype(jnp.float32)
    b2c = b2.reshape(-1, 1).astype(jnp.float32)
    b3c = b3.reshape(-1, 1).astype(jnp.float32)

    # Lane-aligned batch tile: multiple of 128, capped by tile_b, shrunk so the grid
    # has >= _MIN_GRID_STEPS steps whenever the batch allows it.
    tile = _round_up(max(1, _cdiv(batch, _MIN_GRID_STEPS)), 128)
    tile = max(128, min(tile, _round_up(tile_b, 128)))
    num_tiles = _cdiv(batch, tile)          # last block may over-read past `batch`

    resident = lambda i: (0, 0)             # constant index map -> not re-fetched per step
    out = pl.pallas_call(
        nn_binclass_kernel,
        out_shape=jax.ShapeDtypeStruct((num_tiles, 1, tile), jnp.float32),
        grid=(num_tiles,),
        in_specs=[
            pl.BlockSpec((tile, in_features), lambda i: (i, 0)),   # streamed x tile
            pl.BlockSpec(w1.shape, resident),                      # (10, 80)
            pl.BlockSpec(b1c.shape, resident),                     # (10, 1)
            pl.BlockSpec(w2.shape, resident),                      # (10, 10)
            pl.BlockSpec(b2c.shape, resident),                     # (10, 1)
            pl.BlockSpec(w3.shape, resident),                      # (1, 10)
            pl.BlockSpec(b3c.shape, resident),                     # (1, 1)
        ],
        out_specs=pl.BlockSpec((1, 1, tile), lambda i: (i, 0, 0)), # lane-dense output block
        compiler_params=pltpu.CompilerParams(
            dimension_semantics=("parallel",),       # batch grid shards across v7x's 2 TCs
            vmem_limit_bytes=32 * 1024 * 1024,       # room for 2x (16384, 80) f32 x buffers
        ),
    )(x, w1, b1c, w2, b2c, w3, b3c)

    # (num_tiles, 1, tile) is flat batch order; drop the over-read tail rows.
    return out.reshape(-1)[:batch].reshape(batch, 1)


def init_params(key, input_size=80, n_layers=2, n_neurons=10, neuron_reduction=1.0):
    """Deterministic init mirroring nn.Linear default U(-1/sqrt(fan_in), 1/sqrt(fan_in)).

    Weights are kept in PyTorch (out, in) layout; biases as (out,) vectors.
    """
    params = []
    fan_in = input_size
    n = n_neurons
    for _ in range(n_layers):
        key, kw, kb = jax.random.split(key, 3)
        bound = 1.0 / float(fan_in) ** 0.5
        w = jax.random.uniform(kw, (n, fan_in), jnp.float32, -bound, bound)
        b = jax.random.uniform(kb, (n,), jnp.float32, -bound, bound)
        params.extend([w, b])
        fan_in = n
        n = round(neuron_reduction * n)
    key, kw, kb = jax.random.split(key, 3)
    bound = 1.0 / float(fan_in) ** 0.5
    w = jax.random.uniform(kw, (1, fan_in), jnp.float32, -bound, bound)
    b = jax.random.uniform(kb, (1,), jnp.float32, -bound, bound)
    params.extend([w, b])
    return tuple(params)


def reference_forward(x, params):
    """Pure-JAX f32 reference of the PyTorch forward."""
    w1, b1, w2, b2, w3, b3 = params
    h = x @ w1.T + b1
    h = h / (1.0 + jnp.abs(h))
    h = h @ w2.T + b2
    h = h / (1.0 + jnp.abs(h))
    z = h @ w3.T + b3
    return jax.nn.sigmoid(z)


if __name__ == "__main__":
    key = jax.random.PRNGKey(0)
    key, kx1, kx2 = jax.random.split(key, 3)

    input_size = 80
    params = init_params(key, input_size=input_size, n_layers=2, n_neurons=10,
                         neuron_reduction=1.0)

    # Small batch: single 128-row tile whose tail over-reads past the 8 real rows.
    x_small = jax.random.normal(kx1, (8, input_size), jnp.float32)
    out_small = jax.block_until_ready(nn_binclass_forward(x_small, params))
    ref_small = reference_forward(x_small, params)
    assert out_small.shape == (8, 1)
    # Tolerance covers the EUP approximate reciprocals in Softsign.
    assert jnp.allclose(out_small, ref_small, rtol=0, atol=5e-3), "mismatch (small)"

    # Multi-tile path: grid of 3 with a ragged tail (300 = 2*128 + 44 rows).
    x_big = jax.random.normal(kx2, (300, input_size), jnp.float32)
    out_big = jax.block_until_ready(nn_binclass_forward(x_big, params, tile_b=128))
    ref_big = reference_forward(x_big, params)
    assert out_big.shape == (300, 1)
    assert jnp.allclose(out_big, ref_big, rtol=0, atol=5e-3), "mismatch (tiled)"

    print("KERNEL_OK")
</pallas_src>

<mosaic_0001>
module attributes {stable_mosaic.version = 11 : i64} {
  func.func @nn_binclass_kernel(%arg0: i32, %arg1: memref<128x80xf32, #tpu.memory_space<vmem>>, %arg2: memref<10x80xf32, #tpu.memory_space<vmem>>, %arg3: memref<10x1xf32, #tpu.memory_space<vmem>>, %arg4: memref<10x10xf32, #tpu.memory_space<vmem>>, %arg5: memref<10x1xf32, #tpu.memory_space<vmem>>, %arg6: memref<1x10xf32, #tpu.memory_space<vmem>>, %arg7: memref<1x1xf32, #tpu.memory_space<vmem>>, %arg8: memref<1x1x128xf32, #tpu.memory_space<vmem>>) attributes {dimension_semantics = [#tpu.dimension_semantics<parallel>], iteration_bounds = array<i64: 1>, scalar_prefetch = 0 : i64, scratch_operands = 0 : i64, tpu.core_type = #tpu.core_type<tc>, window_params = [{transform_indices = @transform_0, window_bounds = array<i64: 128, 80>}, {pipeline_mode = #tpu.pipeline_mode<synchronous>, transform_indices = @transform_1, window_bounds = array<i64: 10, 80>}, {pipeline_mode = #tpu.pipeline_mode<synchronous>, transform_indices = @transform_2, window_bounds = array<i64: 10, 1>}, {pipeline_mode = #tpu.pipeline_mode<synchronous>, transform_indices = @transform_3, window_bounds = array<i64: 10, 10>}, {pipeline_mode = #tpu.pipeline_mode<synchronous>, transform_indices = @transform_4, window_bounds = array<i64: 10, 1>}, {pipeline_mode = #tpu.pipeline_mode<synchronous>, transform_indices = @transform_5, window_bounds = array<i64: 1, 10>}, {pipeline_mode = #tpu.pipeline_mode<synchronous>, transform_indices = @transform_6, window_bounds = array<i64: 1, 1>}, {transform_indices = @transform_7, window_bounds = array<i64: 1, 1, 128>}]} {
    %c0 = arith.constant 0 : index
    %c0_0 = arith.constant 0 : index
    %0 = vector.load %arg2[%c0, %c0_0] : memref<10x80xf32, #tpu.memory_space<vmem>>, vector<10x80xf32>
    %c0_1 = arith.constant 0 : index
    %c0_2 = arith.constant 0 : index
    %1 = vector.load %arg1[%c0_1, %c0_2] : memref<128x80xf32, #tpu.memory_space<vmem>>, vector<128x80xf32>
    %cst = arith.constant dense<0.000000e+00> : vector<10x128xf32>
    %2 = tpu.matmul %0, %1, %cst {dimension_numbers = #tpu.dot_dimension_numbers<[1], [1], [0], [0], [0, 0, 1, 0], [], []>} : vector<10x80xf32>, vector<128x80xf32>, vector<10x128xf32> -> vector<10x128xf32>
    %c0_3 = arith.constant 0 : index
    %c0_4 = arith.constant 0 : index
    %3 = vector.load %arg3[%c0_3, %c0_4] : memref<10x1xf32, #tpu.memory_space<vmem>>, vector<10x1xf32>
    %4 = vector.broadcast %3 : vector<10x1xf32> to vector<10x128xf32>
    %5 = arith.addf %2, %4 : vector<10x128xf32>
    %6 = math.absf %5 : vector<10x128xf32>
    %cst_5 = arith.constant 1.000000e+00 : f32
    %7 = vector.broadcast %cst_5 : f32 to vector<10x128xf32>
    %8 = arith.addf %7, %6 : vector<10x128xf32>
    %9 = tpu.reciprocal %8 {approx = true} : vector<10x128xf32> -> vector<10x128xf32>
    %10 = arith.mulf %5, %9 : vector<10x128xf32>
    %c0_6 = arith.constant 0 : index
    %c0_7 = arith.constant 0 : index
    %11 = vector.load %arg4[%c0_6, %c0_7] : memref<10x10xf32, #tpu.memory_space<vmem>>, vector<10x10xf32>
    %cst_8 = arith.constant dense<0.000000e+00> : vector<10x128xf32>
    %12 = tpu.matmul %11, %10, %cst_8 {dimension_numbers = #tpu.dot_dimension_numbers<[1], [0], [0], [1], [0, 0, 1, 1], [], []>} : vector<10x10xf32>, vector<10x128xf32>, vector<10x128xf32> -> vector<10x128xf32>
    %c0_9 = arith.constant 0 : index
    %c0_10 = arith.constant 0 : index
    %13 = vector.load %arg5[%c0_9, %c0_10] : memref<10x1xf32, #tpu.memory_space<vmem>>, vector<10x1xf32>
    %14 = vector.broadcast %13 : vector<10x1xf32> to vector<10x128xf32>
    %15 = arith.addf %12, %14 : vector<10x128xf32>
    %16 = math.absf %15 : vector<10x128xf32>
    %cst_11 = arith.constant 1.000000e+00 : f32
    %17 = vector.broadcast %cst_11 : f32 to vector<10x128xf32>
    %18 = arith.addf %17, %16 : vector<10x128xf32>
    %19 = tpu.reciprocal %18 {approx = true} : vector<10x128xf32> -> vector<10x128xf32>
    %20 = arith.mulf %15, %19 : vector<10x128xf32>
    %c0_12 = arith.constant 0 : index
    %c0_13 = arith.constant 0 : index
    %21 = vector.load %arg6[%c0_12, %c0_13] : memref<1x10xf32, #tpu.memory_space<vmem>>, vector<1x10xf32>
    %cst_14 = arith.constant dense<0.000000e+00> : vector<1x128xf32>
    %22 = tpu.matmul %21, %20, %cst_14 {dimension_numbers = #tpu.dot_dimension_numbers<[1], [0], [0], [1], [0, 0, 1, 1], [], []>} : vector<1x10xf32>, vector<10x128xf32>, vector<1x128xf32> -> vector<1x128xf32>
    %c0_15 = arith.constant 0 : index
    %c0_16 = arith.constant 0 : index
    %23 = vector.load %arg7[%c0_15, %c0_16] : memref<1x1xf32, #tpu.memory_space<vmem>>, vector<1x1xf32>
    %24 = vector.broadcast %23 : vector<1x1xf32> to vector<1x128xf32>
    %25 = arith.addf %22, %24 : vector<1x128xf32>
    %cst_17 = arith.constant 5.000000e-01 : f32
    %26 = vector.broadcast %cst_17 : f32 to vector<1x128xf32>
    %27 = arith.mulf %26, %25 : vector<1x128xf32>
    %28 = math.tanh %27 : vector<1x128xf32>
    %cst_18 = arith.constant 1.000000e+00 : f32
    %29 = vector.broadcast %cst_18 : f32 to vector<1x128xf32>
    %30 = arith.addf %28, %29 : vector<1x128xf32>
    %cst_19 = arith.constant 5.000000e-01 : f32
    %31 = vector.broadcast %cst_19 : f32 to vector<1x128xf32>
    %32 = arith.mulf %31, %30 : vector<1x128xf32>
    %33 = vector.shape_cast %32 : vector<1x128xf32> to vector<1x1x128xf32>
    %c0_20 = arith.constant 0 : index
    %c0_21 = arith.constant 0 : index
    %c0_22 = arith.constant 0 : index
    %34 = vector.load %arg8[%c0_20, %c0_21, %c0_22] : memref<1x1x128xf32, #tpu.memory_space<vmem>>, vector<1x1x128xf32>
    tpu.vector_store %arg8[%c0_20, %c0_21, %c0_22], %33 {strides = array<i32>} : memref<1x1x128xf32, #tpu.memory_space<vmem>>, vector<1x1x128xf32>,
    return
  }
  func.func @transform_0(%arg0: i32) -> (i32, i32) {
    %c0_i32 = arith.constant 0 : i32
    %c0_i32_0 = arith.constant 0 : i32
    return %arg0, %c0_i32 : i32, i32
  }
  func.func @transform_1(%arg0: i32) -> (i32, i32) {
    %c0_i32 = arith.constant 0 : i32
    %c0_i32_0 = arith.constant 0 : i32
    %c0_i32_1 = arith.constant 0 : i32
    return %c0_i32, %c0_i32_0 : i32, i32
  }
  func.func @transform_2(%arg0: i32) -> (i32, i32) {
    %c0_i32 = arith.constant 0 : i32
    %c0_i32_0 = arith.constant 0 : i32
    %c0_i32_1 = arith.constant 0 : i32
    return %c0_i32, %c0_i32_0 : i32, i32
  }
  func.func @transform_3(%arg0: i32) -> (i32, i32) {
    %c0_i32 = arith.constant 0 : i32
    %c0_i32_0 = arith.constant 0 : i32
    %c0_i32_1 = arith.constant 0 : i32
    return %c0_i32, %c0_i32_0 : i32, i32
  }
  func.func @transform_4(%arg0: i32) -> (i32, i32) {
    %c0_i32 = arith.constant 0 : i32
    %c0_i32_0 = arith.constant 0 : i32
    %c0_i32_1 = arith.constant 0 : i32
    return %c0_i32, %c0_i32_0 : i32, i32
  }
  func.func @transform_5(%arg0: i32) -> (i32, i32) {
    %c0_i32 = arith.constant 0 : i32
    %c0_i32_0 = arith.constant 0 : i32
    %c0_i32_1 = arith.constant 0 : i32
    return %c0_i32, %c0_i32_0 : i32, i32
  }
  func.func @transform_6(%arg0: i32) -> (i32, i32) {
    %c0_i32 = arith.constant 0 : i32
    %c0_i32_0 = arith.constant 0 : i32
    %c0_i32_1 = arith.constant 0 : i32
    return %c0_i32, %c0_i32_0 : i32, i32
  }
  func.func @transform_7(%arg0: i32) -> (i32, i32, i32) {
    %c0_i32 = arith.constant 0 : i32
    %c0_i32_0 = arith.constant 0 : i32
    %c0_i32_1 = arith.constant 0 : i32
    return %arg0, %c0_i32, %c0_i32_0 : i32, i32, i32
  }
}

</mosaic_0001>

<llo_original>
// kernel: nn_binclass_forward.1
$region0: #{nn_binclass_forward.1}
  #allocation0 [shape = 'u32[]', space=smem, size = 0x4, offset = 0x4, fixed_abs, tag = 'smem constant byte address 0x4 - core index']
  #allocation1 [shape = 'u32[72,128]{1,0:T(1,128)}', space=vmem, size = 0x9000, scoped, tag = 'internal scratch']
  #allocation2 [shape = 'f32[1,1]{1,0:T(1,128)S(1)}', space=vmem, size = 0x200, scoped, tag = 'scoped memory for nn_binclass_forward.1']
  %s0 = inlined_call_operand.hbm [shape: f32[8,80], index: 0, kind: input, shape index: {}]
  %s1 = inlined_call_operand.vmem [shape: f32[10,80], index: 1, kind: input, shape index: {}]
  %s2 = inlined_call_operand.vmem [shape: f32[10,1], index: 2, kind: input, shape index: {}]
  %s3 = inlined_call_operand.vmem [shape: f32[10,10], index: 3, kind: input, shape index: {}]
  %s4 = inlined_call_operand.vmem [shape: f32[10,1], index: 4, kind: input, shape index: {}]
  %s5 = inlined_call_operand.vmem [shape: f32[1,10], index: 5, kind: input, shape index: {}]
  %s6 = inlined_call_operand.<no memory space> [shape: f32[1,1], index: 6, kind: input, shape index: {}]
  %s7 = inlined_call_operand.vmem [shape: f32[1,1,128], index: 7, kind: output, shape index: {}]
  %s8 = sld [smem:[#allocation0]]
  $region42: #{nn_binclass_forward.1} parent=0
    _
  %s10 = ssub.s32 1, %s8
  %s11 = scalar_select 0, %s10, %s8
  %v12 = vstv %s6
  %13 = vst [vmem:[#allocation2] sm:$0x1] %v12
  $region1: #{nn_binclass_forward.1} parent=0
    #allocation3 [shape = 'u8[65536]{0}', space=vmem, size = 0x10000, scoped, tag = 'input window, operand 0, single buffered']
    #allocation4 [shape = 's32[1]{0}', space=sflag, size = 0x4, scoped, tag = 'scoped memory for nn_binclass_forward.1']
    %14 = vsyncpa [#allocation4], 0
    // Predicated region
    $region2: #{nn_binclass_forward.1} parent=1 // pred_check
      _
    $region3: #{nn_binclass_forward.1} parent=1 // pred_check_branch
      %16 = sbr.rel (0) target = $region5
    $region4: #{nn_binclass_forward.1} parent=1 // pred_region
      %18 = vsyncadd [#allocation4], 1920
      %s19 = sshll.u32 %s0, 4
      %s20 = int_to_ptr.hbm [resolvable:$true] %s19
      %s21 = sshll.u32 [#allocation3], 4
      %s22 = int_to_ptr.vmem [resolvable:$true] %s21
      %27 = dma.hbm_to_vmem [thread:$0]  %s20, 128, %s22, [#allocation4], 128, 128, 8
    $region5: #{nn_binclass_forward.1} parent=1 // pred_fallthru
      _
    // Predicated region
    $region6: #{nn_binclass_forward.1} parent=1 // pred_check
      _
    $region7: #{nn_binclass_forward.1} parent=1 // pred_check_branch
      %29 = sbr.rel (0) target = $region9
    $region8: #{nn_binclass_forward.1} parent=1 // pred_region
      _
    $region9: #{nn_binclass_forward.1} parent=1 // pred_fallthru
      _
    // Predicated region
    $region10: #{nn_binclass_forward.1} parent=1 // pred_check
      _
    $region11: #{nn_binclass_forward.1} parent=1 // pred_check_branch
      %31 = sbr.rel (0) target = $region13
    $region12: #{nn_binclass_forward.1} parent=1 // pred_region
      _
    $region13: #{nn_binclass_forward.1} parent=1 // pred_fallthru
      _
    // Predicated region
    $region14: #{nn_binclass_forward.1} parent=1 // pred_check
      _
    $region15: #{nn_binclass_forward.1} parent=1 // pred_check_branch
      %33 = sbr.rel (0) target = $region17
    $region16: #{nn_binclass_forward.1} parent=1 // pred_region
      _
    $region17: #{nn_binclass_forward.1} parent=1 // pred_fallthru
      _
    // Predicated region
    $region18: #{nn_binclass_forward.1} parent=1 // pred_check
      _
    $region19: #{nn_binclass_forward.1} parent=1 // pred_check_branch
      %35 = sbr.rel (0) target = $region21
    $region20: #{nn_binclass_forward.1} parent=1 // pred_region
      _
    $region21: #{nn_binclass_forward.1} parent=1 // pred_fallthru
      _
    // Predicated region
    $region22: #{nn_binclass_forward.1} parent=1 // pred_check
      _
    $region23: #{nn_binclass_forward.1} parent=1 // pred_check_branch
      %37 = sbr.rel (0) target = $region25
    $region24: #{nn_binclass_forward.1} parent=1 // pred_region
      _
    $region25: #{nn_binclass_forward.1} parent=1 // pred_fallthru
      _
    // Predicated region
    $region26: #{nn_binclass_forward.1} parent=1 // pred_check
      _
    $region27: #{nn_binclass_forward.1} parent=1 // pred_check_branch
      %39 = sbr.rel (0) target = $region29
    $region28: #{nn_binclass_forward.1} parent=1 // pred_region
      _
    $region29: #{nn_binclass_forward.1} parent=1 // pred_fallthru
      _
    // Predicated region
    $region30: #{nn_binclass_forward.1} parent=1 // pred_check
      _
    $region31: #{nn_binclass_forward.1} parent=1 // pred_check_branch
      %41 = sbr.rel (0) target = $region33
    $region32: #{nn_binclass_forward.1} parent=1 // pred_region
      %43 = dma.done [#allocation4], 2048
    $region33: #{nn_binclass_forward.1} parent=1 // pred_fallthru
      _
    %v44 = vld [vmem:[%s1] sm:$0xff]
    %v45 = vld [vmem:[%s1 + $0x8] sm:$0x3]
    %v46 = vld [vmem:[#allocation3] sm:$0xff]
    %v47 = vld [vmem:[#allocation3 + $0x8] sm:$0xff]
    %v48 = vld [vmem:[#allocation3 + $0x10] sm:$0xff]
    %v49 = vld [vmem:[#allocation3 + $0x18] sm:$0xff]
    %v50 = vld [vmem:[#allocation3 + $0x20] sm:$0xff]
    %v51 = vld [vmem:[#allocation3 + $0x28] sm:$0xff]
    %v52 = vld [vmem:[#allocation3 + $0x30] sm:$0xff]
    %v53 = vld [vmem:[#allocation3 + $0x38] sm:$0xff]
    %v54 = vld [vmem:[#allocation3 + $0x40] sm:$0xff]
    %v55 = vld [vmem:[#allocation3 + $0x48] sm:$0xff]
    %v56 = vld [vmem:[#allocation3 + $0x50] sm:$0xff]
    %v57 = vld [vmem:[#allocation3 + $0x58] sm:$0xff]
    %v58 = vld [vmem:[#allocation3 + $0x60] sm:$0xff]
    %v59 = vld [vmem:[#allocation3 + $0x68] sm:$0xff]
    %v60 = vld [vmem:[#allocation3 + $0x70] sm:$0xff]
    %v61 = vld [vmem:[#allocation3 + $0x78] sm:$0xff]
    %v62 = vld [vmem:[%s2] sm:$0xff]
    %v63 = vld [vmem:[%s2 + $0x8] sm:$0x3]
    %65 = vset.pattern.permute.xlu0 0
    %66 = vperm.xlu0 %65, %v62
    %v67 = vpop.permute.xlu0 %66
    %70 = vset.pattern.permute.xlu0 0
    %71 = vperm.xlu0 %70, %v63
    %v72 = vpop.permute.xlu0 %71
    %vm74 = vcmask 654336
    %v76 = vsel %vm74, %v44, 0
    %v79 = vsel %vm74, %v45, 0
    %v82 = vsel %vm74, %v46, 0
    %v85 = vsel %vm74, %v47, 0
    %v88 = vsel %vm74, %v48, 0
    %v91 = vsel %vm74, %v49, 0
    %v94 = vsel %vm74, %v50, 0
    %v97 = vsel %vm74, %v51, 0
    %v100 = vsel %vm74, %v52, 0
    %v103 = vsel %vm74, %v53, 0
    %v106 = vsel %vm74, %v54, 0
    %v109 = vsel %vm74, %v55, 0
    %v112 = vsel %vm74, %v56, 0
    %v115 = vsel %vm74, %v57, 0
    %v118 = vsel %vm74, %v58, 0
    %v121 = vsel %vm74, %v59, 0
    %v124 = vsel %vm74, %v60, 0
    %v127 = vsel %vm74, %v61, 0
    %129 = vmatpush.xpose.msra.mxu0 %v127
    %130 = vmatpush.xpose.msra.mxu0 %v124
    %131 = vmatpush.xpose.msra.mxu0 %v121
    %132 = vmatpush.xpose.msra.mxu0 %v118
    %133 = vmatpush.xpose.msra.mxu0 %v115
    %134 = vmatpush.xpose.msra.mxu0 %v112
    %135 = vmatpush.xpose.msra.mxu0 %v109
    %136 = vmatpush.xpose.msra.mxu0 %v106
    %137 = vmatpush.xpose.msra.mxu0 %v103
    %138 = vmatpush.xpose.msra.mxu0 %v100
    %139 = vmatpush.xpose.msra.mxu0 %v97
    %140 = vmatpush.xpose.msra.mxu0 %v94
    %141 = vmatpush.xpose.msra.mxu0 %v91
    %142 = vmatpush.xpose.msra.mxu0 %v88
    %143 = vmatpush.xpose.msra.mxu0 %v85
    %144 = vmatpush.xpose.msra.mxu0 %v82
    %145 = vmatmul.f32.gmra.mxu0 %v76
    %v146 = vpop.f32.mrf.mxu0
    %v147 = vadd.f32 %v67, %v146
    %148 = vmatmul.f32.gmra.mxu0 %v79
    %v149 = vpop.f32.mrf.mxu0
    %v150 = vadd.f32 %v72, %v149
    %151 = vdwg.mxu0
    %v152 = vand.u32 2147483647, %v147
    %v153 = vand.u32 2147483647, %v150
    %v154 = vadd.f32 %v152, 1.0
    %v155 = vadd.f32 %v153, 1.0
    %v156 = vrcp.pop %v154
    %v157 = vrcp.pop %v155
    %v158 = vmul.f32 %v147, %v156
    %v159 = vmul.f32 %v150, %v157
    %v160 = vld [vmem:[%s3] sm:$0xff]
    %v161 = vld [vmem:[%s3 + $0x8] sm:$0x3]
    %v162 = vld [vmem:[%s4] sm:$0xff]
    %v163 = vld [vmem:[%s4 + $0x8] sm:$0x3]
    %165 = vset.pattern.permute.xlu0 0
    %166 = vperm.xlu0 %165, %v162
    %v167 = vpop.permute.xlu0 %166
    %170 = vset.pattern.permute.xlu0 0
    %171 = vperm.xlu0 %170, %v163
    %v172 = vpop.permute.xlu0 %171
    %vm174 = vcmask 80896
    %v176 = vsel %vm174, %v160, 0
    %v179 = vsel %vm174, %v161, 0
    %vm181 = vcmask 1041408
    %v183 = vsel %vm181, %v159, 0
    %185 = vmatpush.msra.mxu0 0.0
    %186 = vmatpush.msra.mxu0 0.0
    %187 = vmatpush.msra.mxu0 0.0
    %188 = vmatpush.msra.mxu0 0.0
    %189 = vmatpush.msra.mxu0 0.0
    %190 = vmatpush.msra.mxu0 0.0
    %191 = vmatpush.msra.mxu0 0.0
    %192 = vmatpush.msra.mxu0 0.0
    %193 = vmatpush.msra.mxu0 0.0
    %194 = vmatpush.msra.mxu0 0.0
    %195 = vmatpush.msra.mxu0 0.0
    %196 = vmatpush.msra.mxu0 0.0
    %197 = vmatpush.msra.mxu0 0.0
    %198 = vmatpush.msra.mxu0 0.0
    %199 = vmatpush.msra.mxu0 %v183
    %200 = vmatpush.msra.mxu0 %v158
    %201 = vmatmul.f32.gmra.mxu0 %v176
    %v202 = vpop.f32.mrf.mxu0
    %v203 = vadd.f32 %v167, %v202
    %204 = vmatmul.f32.gmra.mxu0 %v179
    %v205 = vpop.f32.mrf.mxu0
    %v206 = vadd.f32 %v172, %v205
    %207 = vdwg.mxu0
    %v208 = vand.u32 2147483647, %v203
    %v209 = vand.u32 2147483647, %v206
    %v210 = vadd.f32 %v208, 1.0
    %v211 = vadd.f32 %v209, 1.0
    %v212 = vrcp.pop %v210
    %v213 = vrcp.pop %v211
    %v214 = vmul.f32 %v203, %v212
    %v215 = vmul.f32 %v206, %v213
    %v216 = vld [vmem:[%s5] sm:$0x1]
    %v217 = vld [vmem:[#allocation2] sm:$0x1]
    %219 = vset.pattern.permute.xlu0 0
    %220 = vperm.xlu0 %219, %v217
    %v221 = vpop.permute.xlu0 %220
    %v223 = vperm.slane %v221, 0
    %v225 = vsel %vm174, %v216, 0
    %v228 = vsel %vm181, %v215, 0
    %230 = vmatpush.msra.mxu0 0.0
    %231 = vmatpush.msra.mxu0 0.0
    %232 = vmatpush.msra.mxu0 0.0
    %233 = vmatpush.msra.mxu0 0.0
    %234 = vmatpush.msra.mxu0 0.0
    %235 = vmatpush.msra.mxu0 0.0
    %236 = vmatpush.msra.mxu0 0.0
    %237 = vmatpush.msra.mxu0 0.0
    %238 = vmatpush.msra.mxu0 0.0
    %239 = vmatpush.msra.mxu0 0.0
    %240 = vmatpush.msra.mxu0 0.0
    %241 = vmatpush.msra.mxu0 0.0
    %242 = vmatpush.msra.mxu0 0.0
    %243 = vmatpush.msra.mxu0 0.0
    %244 = vmatpush.msra.mxu0 %v228
    %245 = vmatpush.msra.mxu0 %v214
    %246 = vmatmul.f32.gmra.mxu0 %v225
    %v247 = vpop.f32.mrf.mxu0
    %v248 = vadd.f32 %v223, %v247
    %249 = vdwg.mxu0
    %v250 = vmul.f32 %v248, 0.5
    %v251 = vtanh.pop %v250
    %v252 = vadd.f32 %v251, 1.0
    %v253 = vmul.f32 %v252, 0.5
    %254 = vst [vmem:[%s7] sm:$0x1] %v253
    // Predicated region
    $region34: #{nn_binclass_forward.1} parent=1 // pred_check
      _
    $region35: #{nn_binclass_forward.1} parent=1 // pred_check_branch
      %256 = sbr.rel (0) target = $region37
    $region36: #{nn_binclass_forward.1} parent=1 // pred_region
      _
    $region37: #{nn_binclass_forward.1} parent=1 // pred_fallthru
      _
    // Predicated region
    $region38: #{nn_binclass_forward.1} parent=1 // pred_check
      _
    $region39: #{nn_binclass_forward.1} parent=1 // pred_check_branch
      %258 = sbr.rel (0) target = $region41
    $region40: #{nn_binclass_forward.1} parent=1 // pred_region
      _
    $region41: #{nn_binclass_forward.1} parent=1 // pred_fallthru
      _
    %259 = vsyncpa [#allocation4], 1

</llo_original>
